<compile_context>
chip_gen: v5e
topology: v5e:2x2
jax: 0.10.0
libtpu: 0.0.40
codegen_flags: <defaults>
</compile_context>

<pallas_src>
import jax
import jax.numpy as jnp
import numpy as np
from jax.experimental import pallas as pl
from jax.experimental.pallas import tpu as pltpu


def _dice_ce_kernel(x_ref, t_ref, inter_ref, card_ref, ce_ref):
    """One (n, h-tile) grid step.

    x_ref    : (C, TH, W) f32 logits slab
    t_ref    : (TH, W)    i32 labels
    inter_ref: (C, W)     f32 per-(class, w) intersection partials (resident over h)
    card_ref : (C, W)     f32 per-(class, w) cardinality partials (resident over h)
    ce_ref   : (1, W)     f32 per-lane cross-entropy partial sums (resident over h)
    """
    C = x_ref.shape[0]

    @pl.when(pl.program_id(1) == 0)
    def _init():
        inter_ref[...] = jnp.zeros_like(inter_ref)
        card_ref[...] = jnp.zeros_like(card_ref)
        ce_ref[...] = jnp.zeros_like(ce_ref)

    t = t_ref[...]                                    # (TH, W) int32
    xs = [x_ref[c] for c in range(C)]                 # C x (TH, W) f32

    # Softmax over the (unrolled) class axis: pure VPU/EUP work on lane-dense tiles.
    m = xs[0]
    for c in range(1, C):
        m = jnp.maximum(m, xs[c])
    es = [jnp.exp(x - m) for x in xs]
    s = es[0]
    for c in range(1, C):
        s = s + es[c]
    inv_s = pl.reciprocal(s, approx=True)             # EUP; only feeds the dice terms

    x_tgt = jnp.zeros_like(m)
    for c in range(C):
        is_c = t == c                                               # one-hot via compare
        p_c = es[c] * inv_s                                         # softmax prob, class c
        inter_row = jnp.sum(jnp.where(is_c, p_c, 0.0),
                            axis=0, keepdims=True)                  # (1, W)
        card_row = (jnp.sum(p_c, axis=0, keepdims=True)
                    + jnp.sum(is_c.astype(jnp.float32),
                              axis=0, keepdims=True))               # (1, W)
        inter_ref[pl.ds(c, 1), :] += inter_row
        card_ref[pl.ds(c, 1), :] += card_row
        x_tgt = x_tgt + jnp.where(is_c, xs[c], 0.0)                 # logit at target class

    # Cross entropy: -log softmax(x)[target] = log(sum exp(x - m)) + m - x_target (exact).
    ce_pix = jnp.log(s) + m - x_tgt                                 # (TH, W)
    ce_ref[...] += jnp.sum(ce_pix, axis=0, keepdims=True)           # (1, W)


def _pick_tile_h(H, W, C, budget_bytes=1 << 20):
    """Largest H-tile that divides H, respects sublane alignment, fits the budget."""
    candidates = [th for th in range(H, 0, -1)
                  if H % th == 0 and (th == H or th % 8 == 0)]
    for th in candidates:
        if C * th * W * 4 <= budget_bytes:
            return th
    return candidates[-1]


@jax.jit
def dice_ce_loss(inputs, targets):
    """inputs: (N, C, H, W) float logits; targets: (N, H, W) integer labels."""
    N, C, H, W = inputs.shape
    x = inputs.astype(jnp.float32)      # NCHW consumed directly, no transpose
    t = targets.astype(jnp.int32)

    th = _pick_tile_h(H, W, C)
    grid = (N, H // th)

    inter_nw, card_nw, ce_rows = pl.pallas_call(
        _dice_ce_kernel,
        out_shape=(
            jax.ShapeDtypeStruct((N, C, W), jnp.float32),   # intersection partials
            jax.ShapeDtypeStruct((N, C, W), jnp.float32),   # cardinality partials
            jax.ShapeDtypeStruct((N, 1, W), jnp.float32),   # CE partial row sums
        ),
        grid_spec=pltpu.PrefetchScalarGridSpec(
            num_scalar_prefetch=0,
            grid=grid,
            in_specs=[
                pl.BlockSpec((None, C, th, W), lambda n, h: (n, 0, h, 0)),
                pl.BlockSpec((None, th, W), lambda n, h: (n, h, 0)),
            ],
            out_specs=[
                pl.BlockSpec((None, C, W), lambda n, h: (n, 0, 0)),
                pl.BlockSpec((None, C, W), lambda n, h: (n, 0, 0)),
                pl.BlockSpec((None, 1, W), lambda n, h: (n, 0, 0)),
            ],
        ),
        compiler_params=pltpu.CompilerParams(
            dimension_semantics=("parallel", "arbitrary")),
    )(x, t)

    # Finalize on tiny arrays; matches the PyTorch reduction dims (0, 2) exactly.
    inter = jnp.sum(inter_nw, axis=0)                           # (C, W)
    card = jnp.sum(card_nw, axis=0)                             # (C, W)
    dice_loss = 1.0 - jnp.mean(2.0 * inter / (card + 1e-07))
    ce = jnp.sum(ce_rows) / jnp.float32(N * H * W)
    return ce * 0.75 + dice_loss * 0.25


def _reference(inputs, targets):
    """Pure-JAX reference mirroring the PyTorch forward exactly."""
    C = inputs.shape[1]
    one_hot = jax.nn.one_hot(targets, C, dtype=inputs.dtype)     # (N, H, W, C)
    one_hot = jnp.transpose(one_hot, (0, 3, 1, 2))               # (N, C, H, W)
    probas = jax.nn.softmax(inputs, axis=1)
    dims = (0, 2)                                                # targets.ndim == 3
    intersection = jnp.sum(probas * one_hot, axis=dims)          # (C, W)
    cardinality = jnp.sum(probas + one_hot, axis=dims)           # (C, W)
    dice_loss = 1.0 - jnp.mean(2.0 * intersection / (cardinality + 1e-07))
    logp = jax.nn.log_softmax(inputs, axis=1)
    ce = -jnp.mean(jnp.sum(logp * one_hot, axis=1))
    return ce * 0.75 + dice_loss * 0.25


if __name__ == "__main__":
    key = jax.random.PRNGKey(0)
    k1, k2 = jax.random.split(key)
    N, C, H, W = 2, 4, 16, 16
    inputs = jax.random.normal(k1, (N, C, H, W), dtype=jnp.float32)
    targets = jax.random.randint(k2, (N, H, W), 0, C, dtype=jnp.int32)

    loss = dice_ce_loss(inputs, targets)
    jax.block_until_ready(loss)

    ref = _reference(inputs, targets)
    np.testing.assert_allclose(np.asarray(loss), np.asarray(ref),
                               rtol=1e-4, atol=1e-4)
    print("KERNEL_OK")
</pallas_src>

<mosaic_0001>
module attributes {stable_mosaic.version = 11 : i64} {
  func.func @_dice_ce_kernel(%arg0: i32, %arg1: i32, %arg2: memref<1x4x16x16xf32, #tpu.memory_space<vmem>>, %arg3: memref<1x16x16xi32, #tpu.memory_space<vmem>>, %arg4: memref<1x4x16xf32, #tpu.memory_space<vmem>>, %arg5: memref<1x4x16xf32, #tpu.memory_space<vmem>>, %arg6: memref<1x1x16xf32, #tpu.memory_space<vmem>>) attributes {dimension_semantics = [#tpu.dimension_semantics<parallel>, #tpu.dimension_semantics<arbitrary>], iteration_bounds = array<i64: 2, 1>, scalar_prefetch = 0 : i64, scratch_operands = 0 : i64, tpu.core_type = #tpu.core_type<tc>, window_params = [{transform_indices = @transform_0, window_bounds = array<i64: 1, 4, 16, 16>}, {transform_indices = @transform_1, window_bounds = array<i64: 1, 16, 16>}, {transform_indices = @transform_2, window_bounds = array<i64: 1, 4, 16>}, {transform_indices = @transform_3, window_bounds = array<i64: 1, 4, 16>}, {transform_indices = @transform_4, window_bounds = array<i64: 1, 1, 16>}]} {
    %c0_i32 = arith.constant 0 : i32
    %0 = arith.cmpi eq, %arg1, %c0_i32 : i32
    %1 = arith.extui %0 : i1 to i32
    %c0_i32_0 = arith.constant 0 : i32
    %2 = arith.cmpi ne, %1, %c0_i32_0 : i32
    scf.if %2 {
      %cst_92 = arith.constant 0.000000e+00 : f32
      %156 = vector.broadcast %cst_92 : f32 to vector<4x16xf32>
      %c0_93 = arith.constant 0 : index
      %c0_94 = arith.constant 0 : index
      %c0_95 = arith.constant 0 : index
      %157 = vector.load %arg4[%c0_93, %c0_94, %c0_95] : memref<1x4x16xf32, #tpu.memory_space<vmem>>, vector<1x4x16xf32>
      %158 = vector.shape_cast %157 : vector<1x4x16xf32> to vector<4x16xf32>
      %159 = vector.shape_cast %156 : vector<4x16xf32> to vector<1x4x16xf32>
      tpu.vector_store %arg4[%c0_93, %c0_94, %c0_95], %159 {strides = array<i32>} : memref<1x4x16xf32, #tpu.memory_space<vmem>>, vector<1x4x16xf32>,
      %cst_96 = arith.constant 0.000000e+00 : f32
      %160 = vector.broadcast %cst_96 : f32 to vector<4x16xf32>
      %c0_97 = arith.constant 0 : index
      %c0_98 = arith.constant 0 : index
      %c0_99 = arith.constant 0 : index
      %161 = vector.load %arg5[%c0_97, %c0_98, %c0_99] : memref<1x4x16xf32, #tpu.memory_space<vmem>>, vector<1x4x16xf32>
      %162 = vector.shape_cast %161 : vector<1x4x16xf32> to vector<4x16xf32>
      %163 = vector.shape_cast %160 : vector<4x16xf32> to vector<1x4x16xf32>
      tpu.vector_store %arg5[%c0_97, %c0_98, %c0_99], %163 {strides = array<i32>} : memref<1x4x16xf32, #tpu.memory_space<vmem>>, vector<1x4x16xf32>,
      %cst_100 = arith.constant 0.000000e+00 : f32
      %164 = vector.broadcast %cst_100 : f32 to vector<1x16xf32>
      %c0_101 = arith.constant 0 : index
      %c0_102 = arith.constant 0 : index
      %c0_103 = arith.constant 0 : index
      %165 = vector.load %arg6[%c0_101, %c0_102, %c0_103] : memref<1x1x16xf32, #tpu.memory_space<vmem>>, vector<1x1x16xf32>
      %166 = vector.shape_cast %165 : vector<1x1x16xf32> to vector<1x16xf32>
      %167 = vector.shape_cast %164 : vector<1x16xf32> to vector<1x1x16xf32>
      tpu.vector_store %arg6[%c0_101, %c0_102, %c0_103], %167 {strides = array<i32>} : memref<1x1x16xf32, #tpu.memory_space<vmem>>, vector<1x1x16xf32>,
    } else {
    }
    %c0 = arith.constant 0 : index
    %c0_1 = arith.constant 0 : index
    %c0_2 = arith.constant 0 : index
    %3 = vector.load %arg3[%c0, %c0_1, %c0_2] : memref<1x16x16xi32, #tpu.memory_space<vmem>>, vector<1x16x16xi32>
    %4 = vector.shape_cast %3 : vector<1x16x16xi32> to vector<16x16xi32>
    %c0_3 = arith.constant 0 : index
    %c0_4 = arith.constant 0 : index
    %c0_5 = arith.constant 0 : index
    %c0_6 = arith.constant 0 : index
    %5 = vector.load %arg2[%c0_3, %c0_4, %c0_5, %c0_6] : memref<1x4x16x16xf32, #tpu.memory_space<vmem>>, vector<1x1x16x16xf32>
    %6 = vector.shape_cast %5 : vector<1x1x16x16xf32> to vector<16x16xf32>
    %c0_7 = arith.constant 0 : index
    %c1 = arith.constant 1 : index
    %c0_8 = arith.constant 0 : index
    %c0_9 = arith.constant 0 : index
    %7 = vector.load %arg2[%c0_7, %c1, %c0_8, %c0_9] : memref<1x4x16x16xf32, #tpu.memory_space<vmem>>, vector<1x1x16x16xf32>
    %8 = vector.shape_cast %7 : vector<1x1x16x16xf32> to vector<16x16xf32>
    %c0_10 = arith.constant 0 : index
    %c2 = arith.constant 2 : index
    %c0_11 = arith.constant 0 : index
    %c0_12 = arith.constant 0 : index
    %9 = vector.load %arg2[%c0_10, %c2, %c0_11, %c0_12] : memref<1x4x16x16xf32, #tpu.memory_space<vmem>>, vector<1x1x16x16xf32>
    %10 = vector.shape_cast %9 : vector<1x1x16x16xf32> to vector<16x16xf32>
    %c0_13 = arith.constant 0 : index
    %c3 = arith.constant 3 : index
    %c0_14 = arith.constant 0 : index
    %c0_15 = arith.constant 0 : index
    %11 = vector.load %arg2[%c0_13, %c3, %c0_14, %c0_15] : memref<1x4x16x16xf32, #tpu.memory_space<vmem>>, vector<1x1x16x16xf32>
    %12 = vector.shape_cast %11 : vector<1x1x16x16xf32> to vector<16x16xf32>
    %13 = arith.maximumf %6, %8 : vector<16x16xf32>
    %14 = arith.maximumf %13, %10 : vector<16x16xf32>
    %15 = arith.maximumf %14, %12 : vector<16x16xf32>
    %16 = arith.subf %6, %15 : vector<16x16xf32>
    %17 = math.exp %16 : vector<16x16xf32>
    %18 = arith.subf %8, %15 : vector<16x16xf32>
    %19 = math.exp %18 : vector<16x16xf32>
    %20 = arith.subf %10, %15 : vector<16x16xf32>
    %21 = math.exp %20 : vector<16x16xf32>
    %22 = arith.subf %12, %15 : vector<16x16xf32>
    %23 = math.exp %22 : vector<16x16xf32>
    %24 = arith.addf %17, %19 : vector<16x16xf32>
    %25 = arith.addf %24, %21 : vector<16x16xf32>
    %26 = arith.addf %25, %23 : vector<16x16xf32>
    %27 = tpu.reciprocal %26 {approx = true} : vector<16x16xf32> -> vector<16x16xf32>
    %cst = arith.constant 0.000000e+00 : f32
    %28 = vector.broadcast %cst : f32 to vector<16x16xf32>
    %c0_i32_16 = arith.constant 0 : i32
    %29 = vector.broadcast %c0_i32_16 : i32 to vector<16x16xi32>
    %30 = arith.cmpi eq, %4, %29 : vector<16x16xi32>
    %31 = arith.mulf %17, %27 : vector<16x16xf32>
    %cst_17 = arith.constant 0.000000e+00 : f32
    %32 = vector.broadcast %cst_17 : f32 to vector<16x16xf32>
    %33 = arith.select %30, %31, %32 : vector<16x16xi1>, vector<16x16xf32>
    %cst_18 = arith.constant dense<0.000000e+00> : vector<16xf32>
    %34 = vector.multi_reduction <add>, %33, %cst_18 [0] : vector<16x16xf32> to vector<16xf32>
    %35 = vector.shape_cast %34 : vector<16xf32> to vector<1x16xf32>
    %cst_19 = arith.constant dense<0.000000e+00> : vector<16xf32>
    %36 = vector.multi_reduction <add>, %31, %cst_19 [0] : vector<16x16xf32> to vector<16xf32>
    %37 = vector.shape_cast %36 : vector<16xf32> to vector<1x16xf32>
    %38 = arith.extui %30 : vector<16x16xi1> to vector<16x16xi32>
    %39 = arith.sitofp %38 : vector<16x16xi32> to vector<16x16xf32>
    %cst_20 = arith.constant dense<0.000000e+00> : vector<16xf32>
    %40 = vector.multi_reduction <add>, %39, %cst_20 [0] : vector<16x16xf32> to vector<16xf32>
    %41 = vector.shape_cast %40 : vector<16xf32> to vector<1x16xf32>
    %42 = arith.addf %37, %41 : vector<1x16xf32>
    %c0_21 = arith.constant 0 : index
    %c0_22 = arith.constant 0 : index
    %c0_23 = arith.constant 0 : index
    %43 = vector.load %arg4[%c0_21, %c0_22, %c0_23] : memref<1x4x16xf32, #tpu.memory_space<vmem>>, vector<1x1x16xf32>
    %44 = vector.shape_cast %43 : vector<1x1x16xf32> to vector<1x16xf32>
    %45 = arith.addf %44, %35 : vector<1x16xf32>
    %c0_24 = arith.constant 0 : index
    %c0_25 = arith.constant 0 : index
    %c0_26 = arith.constant 0 : index
    %46 = vector.load %arg4[%c0_24, %c0_25, %c0_26] : memref<1x4x16xf32, #tpu.memory_space<vmem>>, vector<1x1x16xf32>
    %47 = vector.shape_cast %46 : vector<1x1x16xf32> to vector<1x16xf32>
    %48 = vector.shape_cast %45 : vector<1x16xf32> to vector<1x1x16xf32>
    tpu.vector_store %arg4[%c0_24, %c0_25, %c0_26], %48 {strides = array<i32>} : memref<1x4x16xf32, #tpu.memory_space<vmem>>, vector<1x1x16xf32>,
    %c0_27 = arith.constant 0 : index
    %c0_28 = arith.constant 0 : index
    %c0_29 = arith.constant 0 : index
    %49 = vector.load %arg5[%c0_27, %c0_28, %c0_29] : memref<1x4x16xf32, #tpu.memory_space<vmem>>, vector<1x1x16xf32>
    %50 = vector.shape_cast %49 : vector<1x1x16xf32> to vector<1x16xf32>
    %51 = arith.addf %50, %42 : vector<1x16xf32>
    %c0_30 = arith.constant 0 : index
    %c0_31 = arith.constant 0 : index
    %c0_32 = arith.constant 0 : index
    %52 = vector.load %arg5[%c0_30, %c0_31, %c0_32] : memref<1x4x16xf32, #tpu.memory_space<vmem>>, vector<1x1x16xf32>
    %53 = vector.shape_cast %52 : vector<1x1x16xf32> to vector<1x16xf32>
    %54 = vector.shape_cast %51 : vector<1x16xf32> to vector<1x1x16xf32>
    tpu.vector_store %arg5[%c0_30, %c0_31, %c0_32], %54 {strides = array<i32>} : memref<1x4x16xf32, #tpu.memory_space<vmem>>, vector<1x1x16xf32>,
    %cst_33 = arith.constant 0.000000e+00 : f32
    %55 = vector.broadcast %cst_33 : f32 to vector<16x16xf32>
    %56 = arith.select %30, %6, %55 : vector<16x16xi1>, vector<16x16xf32>
    %57 = arith.addf %28, %56 : vector<16x16xf32>
    %c1_i32 = arith.constant 1 : i32
    %58 = vector.broadcast %c1_i32 : i32 to vector<16x16xi32>
    %59 = arith.cmpi eq, %4, %58 : vector<16x16xi32>
    %60 = arith.mulf %19, %27 : vector<16x16xf32>
    %cst_34 = arith.constant 0.000000e+00 : f32
    %61 = vector.broadcast %cst_34 : f32 to vector<16x16xf32>
    %62 = arith.select %59, %60, %61 : vector<16x16xi1>, vector<16x16xf32>
    %cst_35 = arith.constant dense<0.000000e+00> : vector<16xf32>
    %63 = vector.multi_reduction <add>, %62, %cst_35 [0] : vector<16x16xf32> to vector<16xf32>
    %64 = vector.shape_cast %63 : vector<16xf32> to vector<1x16xf32>
    %cst_36 = arith.constant dense<0.000000e+00> : vector<16xf32>
    %65 = vector.multi_reduction <add>, %60, %cst_36 [0] : vector<16x16xf32> to vector<16xf32>
    %66 = vector.shape_cast %65 : vector<16xf32> to vector<1x16xf32>
    %67 = arith.extui %59 : vector<16x16xi1> to vector<16x16xi32>
    %68 = arith.sitofp %67 : vector<16x16xi32> to vector<16x16xf32>
    %cst_37 = arith.constant dense<0.000000e+00> : vector<16xf32>
    %69 = vector.multi_reduction <add>, %68, %cst_37 [0] : vector<16x16xf32> to vector<16xf32>
    %70 = vector.shape_cast %69 : vector<16xf32> to vector<1x16xf32>
    %71 = arith.addf %66, %70 : vector<1x16xf32>
    %c0_38 = arith.constant 0 : index
    %c1_39 = arith.constant 1 : index
    %c0_40 = arith.constant 0 : index
    %72 = vector.load %arg4[%c0_38, %c1_39, %c0_40] : memref<1x4x16xf32, #tpu.memory_space<vmem>>, vector<1x1x16xf32>
    %73 = vector.shape_cast %72 : vector<1x1x16xf32> to vector<1x16xf32>
    %74 = arith.addf %73, %64 : vector<1x16xf32>
    %c0_41 = arith.constant 0 : index
    %c1_42 = arith.constant 1 : index
    %c0_43 = arith.constant 0 : index
    %75 = vector.load %arg4[%c0_41, %c1_42, %c0_43] : memref<1x4x16xf32, #tpu.memory_space<vmem>>, vector<1x1x16xf32>
    %76 = vector.shape_cast %75 : vector<1x1x16xf32> to vector<1x16xf32>
    %77 = vector.shape_cast %74 : vector<1x16xf32> to vector<1x1x16xf32>
    tpu.vector_store %arg4[%c0_41, %c1_42, %c0_43], %77 {strides = array<i32>} : memref<1x4x16xf32, #tpu.memory_space<vmem>>, vector<1x1x16xf32>,
    %c0_44 = arith.constant 0 : index
    %c1_45 = arith.constant 1 : index
    %c0_46 = arith.constant 0 : index
    %78 = vector.load %arg5[%c0_44, %c1_45, %c0_46] : memref<1x4x16xf32, #tpu.memory_space<vmem>>, vector<1x1x16xf32>
    %79 = vector.shape_cast %78 : vector<1x1x16xf32> to vector<1x16xf32>
    %80 = arith.addf %79, %71 : vector<1x16xf32>
    %c0_47 = arith.constant 0 : index
    %c1_48 = arith.constant 1 : index
    %c0_49 = arith.constant 0 : index
    %81 = vector.load %arg5[%c0_47, %c1_48, %c0_49] : memref<1x4x16xf32, #tpu.memory_space<vmem>>, vector<1x1x16xf32>
    %82 = vector.shape_cast %81 : vector<1x1x16xf32> to vector<1x16xf32>
    %83 = vector.shape_cast %80 : vector<1x16xf32> to vector<1x1x16xf32>
    tpu.vector_store %arg5[%c0_47, %c1_48, %c0_49], %83 {strides = array<i32>} : memref<1x4x16xf32, #tpu.memory_space<vmem>>, vector<1x1x16xf32>,
    %cst_50 = arith.constant 0.000000e+00 : f32
    %84 = vector.broadcast %cst_50 : f32 to vector<16x16xf32>
    %85 = arith.select %59, %8, %84 : vector<16x16xi1>, vector<16x16xf32>
    %86 = arith.addf %57, %85 : vector<16x16xf32>
    %c2_i32 = arith.constant 2 : i32
    %87 = vector.broadcast %c2_i32 : i32 to vector<16x16xi32>
    %88 = arith.cmpi eq, %4, %87 : vector<16x16xi32>
    %89 = arith.mulf %21, %27 : vector<16x16xf32>
    %cst_51 = arith.constant 0.000000e+00 : f32
    %90 = vector.broadcast %cst_51 : f32 to vector<16x16xf32>
    %91 = arith.select %88, %89, %90 : vector<16x16xi1>, vector<16x16xf32>
    %cst_52 = arith.constant dense<0.000000e+00> : vector<16xf32>
    %92 = vector.multi_reduction <add>, %91, %cst_52 [0] : vector<16x16xf32> to vector<16xf32>
    %93 = vector.shape_cast %92 : vector<16xf32> to vector<1x16xf32>
    %cst_53 = arith.constant dense<0.000000e+00> : vector<16xf32>
    %94 = vector.multi_reduction <add>, %89, %cst_53 [0] : vector<16x16xf32> to vector<16xf32>
    %95 = vector.shape_cast %94 : vector<16xf32> to vector<1x16xf32>
    %96 = arith.extui %88 : vector<16x16xi1> to vector<16x16xi32>
    %97 = arith.sitofp %96 : vector<16x16xi32> to vector<16x16xf32>
    %cst_54 = arith.constant dense<0.000000e+00> : vector<16xf32>
    %98 = vector.multi_reduction <add>, %97, %cst_54 [0] : vector<16x16xf32> to vector<16xf32>
    %99 = vector.shape_cast %98 : vector<16xf32> to vector<1x16xf32>
    %100 = arith.addf %95, %99 : vector<1x16xf32>
    %c0_55 = arith.constant 0 : index
    %c2_56 = arith.constant 2 : index
    %c0_57 = arith.constant 0 : index
    %101 = vector.load %arg4[%c0_55, %c2_56, %c0_57] : memref<1x4x16xf32, #tpu.memory_space<vmem>>, vector<1x1x16xf32>
    %102 = vector.shape_cast %101 : vector<1x1x16xf32> to vector<1x16xf32>
    %103 = arith.addf %102, %93 : vector<1x16xf32>
    %c0_58 = arith.constant 0 : index
    %c2_59 = arith.constant 2 : index
    %c0_60 = arith.constant 0 : index
    %104 = vector.load %arg4[%c0_58, %c2_59, %c0_60] : memref<1x4x16xf32, #tpu.memory_space<vmem>>, vector<1x1x16xf32>
    %105 = vector.shape_cast %104 : vector<1x1x16xf32> to vector<1x16xf32>
    %106 = vector.shape_cast %103 : vector<1x16xf32> to vector<1x1x16xf32>
    tpu.vector_store %arg4[%c0_58, %c2_59, %c0_60], %106 {strides = array<i32>} : memref<1x4x16xf32, #tpu.memory_space<vmem>>, vector<1x1x16xf32>,
    %c0_61 = arith.constant 0 : index
    %c2_62 = arith.constant 2 : index
    %c0_63 = arith.constant 0 : index
    %107 = vector.load %arg5[%c0_61, %c2_62, %c0_63] : memref<1x4x16xf32, #tpu.memory_space<vmem>>, vector<1x1x16xf32>
    %108 = vector.shape_cast %107 : vector<1x1x16xf32> to vector<1x16xf32>
    %109 = arith.addf %108, %100 : vector<1x16xf32>
    %c0_64 = arith.constant 0 : index
    %c2_65 = arith.constant 2 : index
    %c0_66 = arith.constant 0 : index
    %110 = vector.load %arg5[%c0_64, %c2_65, %c0_66] : memref<1x4x16xf32, #tpu.memory_space<vmem>>, vector<1x1x16xf32>
    %111 = vector.shape_cast %110 : vector<1x1x16xf32> to vector<1x16xf32>
    %112 = vector.shape_cast %109 : vector<1x16xf32> to vector<1x1x16xf32>
    tpu.vector_store %arg5[%c0_64, %c2_65, %c0_66], %112 {strides = array<i32>} : memref<1x4x16xf32, #tpu.memory_space<vmem>>, vector<1x1x16xf32>,
    %cst_67 = arith.constant 0.000000e+00 : f32
    %113 = vector.broadcast %cst_67 : f32 to vector<16x16xf32>
    %114 = arith.select %88, %10, %113 : vector<16x16xi1>, vector<16x16xf32>
    %115 = arith.addf %86, %114 : vector<16x16xf32>
    %c3_i32 = arith.constant 3 : i32
    %116 = vector.broadcast %c3_i32 : i32 to vector<16x16xi32>
    %117 = arith.cmpi eq, %4, %116 : vector<16x16xi32>
    %118 = arith.mulf %23, %27 : vector<16x16xf32>
    %cst_68 = arith.constant 0.000000e+00 : f32
    %119 = vector.broadcast %cst_68 : f32 to vector<16x16xf32>
    %120 = arith.select %117, %118, %119 : vector<16x16xi1>, vector<16x16xf32>
    %cst_69 = arith.constant dense<0.000000e+00> : vector<16xf32>
    %121 = vector.multi_reduction <add>, %120, %cst_69 [0] : vector<16x16xf32> to vector<16xf32>
    %122 = vector.shape_cast %121 : vector<16xf32> to vector<1x16xf32>
    %cst_70 = arith.constant dense<0.000000e+00> : vector<16xf32>
    %123 = vector.multi_reduction <add>, %118, %cst_70 [0] : vector<16x16xf32> to vector<16xf32>
    %124 = vector.shape_cast %123 : vector<16xf32> to vector<1x16xf32>
    %125 = arith.extui %117 : vector<16x16xi1> to vector<16x16xi32>
    %126 = arith.sitofp %125 : vector<16x16xi32> to vector<16x16xf32>
    %cst_71 = arith.constant dense<0.000000e+00> : vector<16xf32>
    %127 = vector.multi_reduction <add>, %126, %cst_71 [0] : vector<16x16xf32> to vector<16xf32>
    %128 = vector.shape_cast %127 : vector<16xf32> to vector<1x16xf32>
    %129 = arith.addf %124, %128 : vector<1x16xf32>
    %c0_72 = arith.constant 0 : index
    %c3_73 = arith.constant 3 : index
    %c0_74 = arith.constant 0 : index
    %130 = vector.load %arg4[%c0_72, %c3_73, %c0_74] : memref<1x4x16xf32, #tpu.memory_space<vmem>>, vector<1x1x16xf32>
    %131 = vector.shape_cast %130 : vector<1x1x16xf32> to vector<1x16xf32>
    %132 = arith.addf %131, %122 : vector<1x16xf32>
    %c0_75 = arith.constant 0 : index
    %c3_76 = arith.constant 3 : index
    %c0_77 = arith.constant 0 : index
    %133 = vector.load %arg4[%c0_75, %c3_76, %c0_77] : memref<1x4x16xf32, #tpu.memory_space<vmem>>, vector<1x1x16xf32>
    %134 = vector.shape_cast %133 : vector<1x1x16xf32> to vector<1x16xf32>
    %135 = vector.shape_cast %132 : vector<1x16xf32> to vector<1x1x16xf32>
    tpu.vector_store %arg4[%c0_75, %c3_76, %c0_77], %135 {strides = array<i32>} : memref<1x4x16xf32, #tpu.memory_space<vmem>>, vector<1x1x16xf32>,
    %c0_78 = arith.constant 0 : index
    %c3_79 = arith.constant 3 : index
    %c0_80 = arith.constant 0 : index
    %136 = vector.load %arg5[%c0_78, %c3_79, %c0_80] : memref<1x4x16xf32, #tpu.memory_space<vmem>>, vector<1x1x16xf32>
    %137 = vector.shape_cast %136 : vector<1x1x16xf32> to vector<1x16xf32>
    %138 = arith.addf %137, %129 : vector<1x16xf32>
    %c0_81 = arith.constant 0 : index
    %c3_82 = arith.constant 3 : index
    %c0_83 = arith.constant 0 : index
    %139 = vector.load %arg5[%c0_81, %c3_82, %c0_83] : memref<1x4x16xf32, #tpu.memory_space<vmem>>, vector<1x1x16xf32>
    %140 = vector.shape_cast %139 : vector<1x1x16xf32> to vector<1x16xf32>
    %141 = vector.shape_cast %138 : vector<1x16xf32> to vector<1x1x16xf32>
    tpu.vector_store %arg5[%c0_81, %c3_82, %c0_83], %141 {strides = array<i32>} : memref<1x4x16xf32, #tpu.memory_space<vmem>>, vector<1x1x16xf32>,
    %cst_84 = arith.constant 0.000000e+00 : f32
    %142 = vector.broadcast %cst_84 : f32 to vector<16x16xf32>
    %143 = arith.select %117, %12, %142 : vector<16x16xi1>, vector<16x16xf32>
    %144 = arith.addf %115, %143 : vector<16x16xf32>
    %145 = math.log %26 : vector<16x16xf32>
    %146 = arith.addf %145, %15 : vector<16x16xf32>
    %147 = arith.subf %146, %144 : vector<16x16xf32>
    %c0_85 = arith.constant 0 : index
    %c0_86 = arith.constant 0 : index
    %c0_87 = arith.constant 0 : index
    %148 = vector.load %arg6[%c0_85, %c0_86, %c0_87] : memref<1x1x16xf32, #tpu.memory_space<vmem>>, vector<1x1x16xf32>
    %149 = vector.shape_cast %148 : vector<1x1x16xf32> to vector<1x16xf32>
    %cst_88 = arith.constant dense<0.000000e+00> : vector<16xf32>
    %150 = vector.multi_reduction <add>, %147, %cst_88 [0] : vector<16x16xf32> to vector<16xf32>
    %151 = vector.shape_cast %150 : vector<16xf32> to vector<1x16xf32>
    %152 = arith.addf %149, %151 : vector<1x16xf32>
    %c0_89 = arith.constant 0 : index
    %c0_90 = arith.constant 0 : index
    %c0_91 = arith.constant 0 : index
    %153 = vector.load %arg6[%c0_89, %c0_90, %c0_91] : memref<1x1x16xf32, #tpu.memory_space<vmem>>, vector<1x1x16xf32>
    %154 = vector.shape_cast %153 : vector<1x1x16xf32> to vector<1x16xf32>
    %155 = vector.shape_cast %152 : vector<1x16xf32> to vector<1x1x16xf32>
    tpu.vector_store %arg6[%c0_89, %c0_90, %c0_91], %155 {strides = array<i32>} : memref<1x1x16xf32, #tpu.memory_space<vmem>>, vector<1x1x16xf32>,
    return
  }
  func.func @transform_0(%arg0: i32, %arg1: i32) -> (i32, i32, i32, i32) {
    %c0_i32 = arith.constant 0 : i32
    %c0_i32_0 = arith.constant 0 : i32
    %c0_i32_1 = arith.constant 0 : i32
    return %arg0, %c0_i32, %arg1, %c0_i32_0 : i32, i32, i32, i32
  }
  func.func @transform_1(%arg0: i32, %arg1: i32) -> (i32, i32, i32) {
    %c0_i32 = arith.constant 0 : i32
    %c0_i32_0 = arith.constant 0 : i32
    return %arg0, %arg1, %c0_i32 : i32, i32, i32
  }
  func.func @transform_2(%arg0: i32, %arg1: i32) -> (i32, i32, i32) {
    %c0_i32 = arith.constant 0 : i32
    %c0_i32_0 = arith.constant 0 : i32
    %c0_i32_1 = arith.constant 0 : i32
    return %arg0, %c0_i32, %c0_i32_0 : i32, i32, i32
  }
  func.func @transform_3(%arg0: i32, %arg1: i32) -> (i32, i32, i32) {
    %c0_i32 = arith.constant 0 : i32
    %c0_i32_0 = arith.constant 0 : i32
    %c0_i32_1 = arith.constant 0 : i32
    return %arg0, %c0_i32, %c0_i32_0 : i32, i32, i32
  }
  func.func @transform_4(%arg0: i32, %arg1: i32) -> (i32, i32, i32) {
    %c0_i32 = arith.constant 0 : i32
    %c0_i32_0 = arith.constant 0 : i32
    %c0_i32_1 = arith.constant 0 : i32
    return %arg0, %c0_i32, %c0_i32_0 : i32, i32, i32
  }
}

</mosaic_0001>

<llo_original>
// kernel: dice_ce_loss.1
$region0: #{dice_ce_loss.1}
  #allocation0 [shape = 'u32[]', space=smem, size = 0x4, offset = 0x4, fixed_abs, tag = 'smem constant byte address 0x4 - core index']
  #allocation1 [shape = 'u32[72,128]{1,0:T(1,128)}', space=vmem, size = 0x9000, scoped, tag = 'internal scratch']
  %s0 = inlined_call_operand.hbm [shape: f32[2,4,16,16], index: 0, kind: input, shape index: {}]
  %s1 = inlined_call_operand.hbm [shape: s32[2,16,16], index: 1, kind: input, shape index: {}]
  %s2 = inlined_call_operand.vmem [shape: f32[2,4,16], index: 2, kind: output, shape index: {0}]
  %s3 = inlined_call_operand.vmem [shape: f32[2,4,16], index: 3, kind: output, shape index: {1}]
  %s4 = inlined_call_operand.vmem [shape: f32[2,1,16], index: 4, kind: output, shape index: {2}]
  %5 = xla_tuple %s2, %s3, %s4
  %s6 = sld [smem:[#allocation0]]
  $region69: #{dice_ce_loss.1} parent=0
    _
  %s8 = ssub.s32 1, %s6
  %s9 = scalar_select 0, %s8, %s6
  $region1: #{dice_ce_loss.1} parent=0
    #allocation2 [shape = 'u8[65536]{0}', space=vmem, size = 0x10000, scoped, tag = 'input window, operand 0']
    #allocation3 [shape = 's32[2]{0}', space=sflag, size = 0x8, scoped, tag = 'scoped memory for dice_ce_loss.1']
    #allocation4 [shape = 'u8[16384]{0}', space=vmem, size = 0x4000, scoped, tag = 'input window, operand 1']
    #allocation5 [shape = 's32[2]{0}', space=sflag, size = 0x8, scoped, tag = 'scoped memory for dice_ce_loss.1']
    %10 = vsyncpa [#allocation3], 0
    %s11 = scalar_lea.sflag [#allocation3], 1
    %12 = vsyncpa %s11, 0
    %13 = vsyncpa [#allocation5], 0
    %s14 = scalar_lea.sflag [#allocation5], 1
    %15 = vsyncpa %s14, 0
    loop: start=0, step=1, limit=4
    $region2: #{dice_ce_loss.1} parent=1 // loop_pre_header
      _
    $region3: #{dice_ce_loss.1} parent=1 // loop_header
      %s17 = sphi 0, %s21
      %p18 = scmp.ge.s32.totalorder %s17, 4
      %s24 = sphi 0, %s36
      %s25 = sphi 0, %s32
      %s26 = sphi 0, %s24
      %s27 = sphi 0, %s25
      %s28 = sphi 0, %s26
      %s29 = sphi 0, %s27
      %s41 = sphi 0, %s43
      %s44 = sphi 0, %s41
      %s45 = sphi 0, %s44
      %s61 = sphi 0, %s45
      %s69 = sphi 0, %s71
      %s72 = sphi 0, %s69
      %s73 = sphi 0, %s72
      %s89 = sphi 0, %s73
      %s95 = sphi 0, %s97
      %s98 = sphi 0, %s95
      %s99 = sphi 0, %s98
      %s115 = sphi 0, %s99
      %s121 = sphi 0, %s123
      %s124 = sphi 0, %s121
      %s125 = sphi 0, %s124
      %s141 = sphi 0, %s125
      %s147 = sphi 0, %s149
      %s150 = sphi 0, %s147
      %s151 = sphi 0, %s150
      %s167 = sphi 0, %s151
    $region4: #{dice_ce_loss.1} parent=1 // loop_header_branch
      %20 = sbr.rel (%p18) target = $region8
    $region5: #{dice_ce_loss.1} parent=1 // loop_body
      %s22 = ssub.s32 %s17, 1
      %s23 = ssub.s32 %s17, 2
      %s30 = sadd.s32 1, %s25
      %p31 = scmp.ge.s32.totalorder %s30, 1
      %s32 = scalar_select %p31, 0, %s30
      %s33 = sadd.s32 1, %s24
      %s34 = scalar_select %p31, %s33, %s24
      %p35 = scmp.ge.s32.totalorder %s34, 2
      %s36 = scalar_select %p35, 0, %s34
      %s37 = ssub.s32 %s24, %s36
      %s38 = ssub.s32 %s25, %s32
      %s39 = sor.u32 %s37, %s38
      %p40 = scmp.eq.s32.totalorder %s39, 0
      %s42 = sadd.s32 %s41, 1
      %s43 = scalar_select %p40, %s41, %s42
      %p46 = pneg %p40
      %p47 = scmp.eq.s32.totalorder %s17, 1
      %p48 = por %p46, %p47
      %p49 = scmp.ne.s32.totalorder %s41, %s44
      %p50 = scmp.eq.s32.totalorder %s17, 0
      %p51 = por %p49, %p50
      %p52 = scmp.ne.s32.totalorder %s41, %s44
      %p53 = scmp.eq.s32.totalorder %s22, 1
      %p54 = por %p52, %p53
      %p55 = scmp.ne.s32.totalorder %s44, %s45
      %p56 = scmp.eq.s32.totalorder %s22, 0
      %p57 = por %p55, %p56
      %p58 = scmp.ne.s32.totalorder %s44, %s45
      %p59 = scmp.eq.s32.totalorder %s23, 1
      %p60 = por %p58, %p59
      %p62 = scmp.ne.s32.totalorder %s45, %s61
      %p63 = scmp.eq.s32.totalorder %s23, 0
      %p64 = por %p62, %p63
      %s65 = ssub.s32 %s24, %s36
      %s66 = ssub.s32 %s25, %s32
      %s67 = sor.u32 %s65, %s66
      %p68 = scmp.eq.s32.totalorder %s67, 0
      %s70 = sadd.s32 %s69, 1
      %s71 = scalar_select %p68, %s69, %s70
      %p74 = pneg %p68
      %p75 = scmp.eq.s32.totalorder %s17, 1
      %p76 = por %p74, %p75
      %p77 = scmp.ne.s32.totalorder %s69, %s72
      %p78 = scmp.eq.s32.totalorder %s17, 0
      %p79 = por %p77, %p78
      %p80 = scmp.ne.s32.totalorder %s69, %s72
      %p81 = scmp.eq.s32.totalorder %s22, 1
      %p82 = por %p80, %p81
      %p83 = scmp.ne.s32.totalorder %s72, %s73
      %p84 = scmp.eq.s32.totalorder %s22, 0
      %p85 = por %p83, %p84
      %p86 = scmp.ne.s32.totalorder %s72, %s73
      %p87 = scmp.eq.s32.totalorder %s23, 1
      %p88 = por %p86, %p87
      %p90 = scmp.ne.s32.totalorder %s73, %s89
      %p91 = scmp.eq.s32.totalorder %s23, 0
      %p92 = por %p90, %p91
      %s93 = ssub.s32 %s24, %s36
      %p94 = scmp.eq.s32.totalorder %s93, 0
      %s96 = sadd.s32 %s95, 1
      %s97 = scalar_select %p94, %s95, %s96
      %p100 = pneg %p94
      %p101 = scmp.eq.s32.totalorder %s17, 1
      %p102 = por %p100, %p101
      %p103 = scmp.ne.s32.totalorder %s95, %s98
      %p104 = scmp.eq.s32.totalorder %s17, 0
      %p105 = por %p103, %p104
      %p106 = scmp.ne.s32.totalorder %s95, %s98
      %p107 = scmp.eq.s32.totalorder %s22, 1
      %p108 = por %p106, %p107
      %p109 = scmp.ne.s32.totalorder %s98, %s99
      %p110 = scmp.eq.s32.totalorder %s22, 0
      %p111 = por %p109, %p110
      %p112 = scmp.ne.s32.totalorder %s98, %s99
      %p113 = scmp.eq.s32.totalorder %s23, 1
      %p114 = por %p112, %p113
      %p116 = scmp.ne.s32.totalorder %s99, %s115
      %p117 = scmp.eq.s32.totalorder %s23, 0
      %p118 = por %p116, %p117
      %s119 = ssub.s32 %s24, %s36
      %p120 = scmp.eq.s32.totalorder %s119, 0
      %s122 = sadd.s32 %s121, 1
      %s123 = scalar_select %p120, %s121, %s122
      %p126 = pneg %p120
      %p127 = scmp.eq.s32.totalorder %s17, 1
      %p128 = por %p126, %p127
      %p129 = scmp.ne.s32.totalorder %s121, %s124
      %p130 = scmp.eq.s32.totalorder %s17, 0
      %p131 = por %p129, %p130
      %p132 = scmp.ne.s32.totalorder %s121, %s124
      %p133 = scmp.eq.s32.totalorder %s22, 1
      %p134 = por %p132, %p133
      %p135 = scmp.ne.s32.totalorder %s124, %s125
      %p136 = scmp.eq.s32.totalorder %s22, 0
      %p137 = por %p135, %p136
      %p138 = scmp.ne.s32.totalorder %s124, %s125
      %p139 = scmp.eq.s32.totalorder %s23, 1
      %p140 = por %p138, %p139
      %p142 = scmp.ne.s32.totalorder %s125, %s141
      %p143 = scmp.eq.s32.totalorder %s23, 0
      %p144 = por %p142, %p143
      %s145 = ssub.s32 %s24, %s36
      %p146 = scmp.eq.s32.totalorder %s145, 0
      %s148 = sadd.s32 %s147, 1
      %s149 = scalar_select %p146, %s147, %s148
      %p152 = pneg %p146
      %p153 = scmp.eq.s32.totalorder %s17, 1
      %p154 = por %p152, %p153
      %p155 = scmp.ne.s32.totalorder %s147, %s150
      %p156 = scmp.eq.s32.totalorder %s17, 0
      %p157 = por %p155, %p156
      %p158 = scmp.ne.s32.totalorder %s147, %s150
      %p159 = scmp.eq.s32.totalorder %s22, 1
      %p160 = por %p158, %p159
      %p161 = scmp.ne.s32.totalorder %s150, %s151
      %p162 = scmp.eq.s32.totalorder %s22, 0
      %p163 = por %p161, %p162
      %p164 = scmp.ne.s32.totalorder %s150, %s151
      %p165 = scmp.eq.s32.totalorder %s23, 1
      %p166 = por %p164, %p165
      %p168 = scmp.ne.s32.totalorder %s151, %s167
      %p169 = scmp.eq.s32.totalorder %s23, 0
      %p170 = por %p168, %p169
      %p171 = scmp.le.s32.totalorder 1, %s17
      %p172 = scmp.lt.s32.totalorder %s17, 3
      %p173 = pnand %p171, %p172
      %p174 = pneg %p173
      // Predicated region
      $region9: #{dice_ce_loss.1} parent=5 // pred_check
        _
      $region10: #{dice_ce_loss.1} parent=5 // pred_check_branch
        %176 = sbr.rel (%p173) target = $region12
      $region11: #{dice_ce_loss.1} parent=5 // pred_region
        %s177 = ssub.s32 %s17, 1
      $region12: #{dice_ce_loss.1} parent=5 // pred_fallthru
        _
      %p178 = scmp.lt.s32.totalorder %s17, 2
      // Predicated region
      $region13: #{dice_ce_loss.1} parent=5 // pred_check
        %p179 = pneg %p178
      $region14: #{dice_ce_loss.1} parent=5 // pred_check_branch
        %181 = sbr.rel (%p179) target = $region16
      $region15: #{dice_ce_loss.1} parent=5 // pred_region
        // Predicated region
        $region17: #{dice_ce_loss.1} parent=15 // pred_check
          %p182 = pneg %p51
        $region18: #{dice_ce_loss.1} parent=15 // pred_check_branch
          %184 = sbr.rel (%p182) target = $region20
        $region19: #{dice_ce_loss.1} parent=15 // pred_region
          %s185 = sand.u32 %s41, 1
          %s186 = scalar_lea.sflag [#allocation3], %s185
          %s187 = sand.u32 %s41, 1
          %s188 = smul.addr %s187, 64
          %s189 = scalar_lea.vmem [#allocation2], %s188
          %s190 = smul.u32 2, %s25
          %192 = vsyncadd %s186, 0
          %s193 = smul.addr %s24, 8
          %s194 = sadd.s32 %s190, %s193
          %s195 = smul.addr %s194, 8
          %s196 = scalar_lea.hbm %s0, %s195
          %s197 = sshll.u32 %s196, 4
          %s198 = int_to_ptr.hbm [resolvable:$true] %s197
          %s199 = sshll.u32 %s189, 4
          %s200 = int_to_ptr.vmem [resolvable:$true] %s199
          %205 = dma.hbm_to_vmem [thread:$0]  %s198, 1024, %s200, %s186, 128, 128, 8
        $region20: #{dice_ce_loss.1} parent=15 // pred_fallthru
          _
        // Predicated region
        $region21: #{dice_ce_loss.1} parent=15 // pred_check
          %p206 = pneg %p79
        $region22: #{dice_ce_loss.1} parent=15 // pred_check_branch
          %208 = sbr.rel (%p206) target = $region24
        $region23: #{dice_ce_loss.1} parent=15 // pred_region
          %s209 = sand.u32 %s69, 1
          %s210 = scalar_lea.sflag [#allocation5], %s209
          %s211 = sand.u32 %s69, 1
          %s212 = smul.addr %s211, 16
          %s213 = scalar_lea.vmem [#allocation4], %s212
          %s214 = smul.u32 2, %s25
          %216 = vsyncadd %s210, 0
          %s217 = smul.addr %s24, 2
          %s218 = sadd.s32 %s214, %s217
          %s219 = smul.addr %s218, 8
          %s220 = scalar_lea.hbm %s1, %s219
          %s221 = sshll.u32 %s220, 4
          %s222 = int_to_ptr.hbm [resolvable:$true] %s221
          %s223 = sshll.u32 %s213, 4
          %s224 = int_to_ptr.vmem [resolvable:$true] %s223
          %229 = dma.hbm_to_vmem [thread:$0]  %s222, 256, %s224, %s210, 128, 128, 8
        $region24: #{dice_ce_loss.1} parent=15 // pred_fallthru
          _
      $region16: #{dice_ce_loss.1} parent=5 // pred_fallthru
        _
      %p230 = scmp.le.s32.totalorder 1, %s17
      %p231 = scmp.lt.s32.totalorder %s17, 3
      %p232 = pnand %p230, %p231
      %p233 = pneg %p232
      // Predicated region
      $region25: #{dice_ce_loss.1} parent=5 // pred_check
        _
      $region26: #{dice_ce_loss.1} parent=5 // pred_check_branch
        %235 = sbr.rel (%p232) target = $region28
      $region27: #{dice_ce_loss.1} parent=5 // pred_region
        %s236 = ssub.s32 %s17, 1
        %s237 = sand.u32 %s44, 1
        %s238 = scalar_lea.sflag [#allocation3], %s237
        %s239 = sand.u32 %s44, 1
        %s240 = smul.addr %s239, 64
        %s241 = scalar_lea.vmem [#allocation2], %s240
        // Predicated region
        $region29: #{dice_ce_loss.1} parent=27 // pred_check
          %p242 = pneg %p57
        $region30: #{dice_ce_loss.1} parent=27 // pred_check_branch
          %244 = sbr.rel (%p242) target = $region32
        $region31: #{dice_ce_loss.1} parent=27 // pred_region
          %246 = dma.done %s238, 1024
        $region32: #{dice_ce_loss.1} parent=27 // pred_fallthru
          _
        %s247 = sand.u32 %s72, 1
        %s248 = scalar_lea.sflag [#allocation5], %s247
        %s249 = sand.u32 %s72, 1
        %s250 = smul.addr %s249, 16
        %s251 = scalar_lea.vmem [#allocation4], %s250
        // Predicated region
        $region33: #{dice_ce_loss.1} parent=27 // pred_check
          %p252 = pneg %p85
        $region34: #{dice_ce_loss.1} parent=27 // pred_check_branch
          %254 = sbr.rel (%p252) target = $region36
        $region35: #{dice_ce_loss.1} parent=27 // pred_region
          %256 = dma.done %s248, 256
        $region36: #{dice_ce_loss.1} parent=27 // pred_fallthru
          _
        %s257 = sand.u32 %s44, 1
        %s258 = scalar_lea.sflag [#allocation3], %s257
        %s259 = sand.u32 %s44, 1
        %s260 = smul.addr %s259, 64
        %s261 = scalar_lea.vmem [#allocation2], %s260
        %p262 = pneg %p57
        %p263 = pneg %p54
        %s264 = sand.u32 %s72, 1
        %s265 = scalar_lea.sflag [#allocation5], %s264
        %s266 = sand.u32 %s72, 1
        %s267 = smul.addr %s266, 16
        %s268 = scalar_lea.vmem [#allocation4], %s267
        %p269 = pneg %p85
        %p270 = pneg %p82
        %p271 = pneg %p111
        %p272 = pneg %p108
        %p273 = scmp.lt.s32.totalorder %s26, 1
        %s274 = scalar_select %p273, %s26, 1
        %s275 = smul.addr %s274, 4
        %s276 = scalar_lea.vmem %s2, %s275
        %p277 = pneg %p137
        %p278 = pneg %p134
        %p279 = scmp.lt.s32.totalorder %s26, 1
        %s280 = scalar_select %p279, %s26, 1
        %s281 = smul.addr %s280, 4
        %s282 = scalar_lea.vmem %s3, %s281
        %p283 = pneg %p163
        %p284 = pneg %p160
        %p285 = scmp.lt.s32.totalorder %s26, 1
        %s286 = scalar_select %p285, %s26, 1
        %s287 = scalar_lea.vmem %s4, %s286
        %s288 = smul.u32 2, %s27
        %s289 = smul.u32 2, %s27
        %p290 = scmp.lt.s32.totalorder %s26, 1
        %s291 = scalar_select %p290, %s26, 1
        %s292 = smul.addr %s291, 4
        %s293 = scalar_lea.vmem %s2, %s292
        %p294 = scmp.lt.s32.totalorder %s26, 1
        %s295 = scalar_select %p294, %s26, 1
        %s296 = smul.addr %s295, 4
        %s297 = scalar_lea.vmem %s3, %s296
        %p298 = scmp.lt.s32.totalorder %s26, 1
        %s299 = scalar_select %p298, %s26, 1
        %s300 = scalar_lea.vmem %s4, %s299
        %p301 = scmp.eq.s32.totalorder %s27, 0
        // Predicated region
        $region37: #{dice_ce_loss.1} parent=27 // pred_check
          %p302 = pneg %p301
        $region38: #{dice_ce_loss.1} parent=27 // pred_check_branch
          %304 = sbr.rel (%p302) target = $region40
        $region39: #{dice_ce_loss.1} parent=27 // pred_region
          %vm305 = vcmask 125952
          %306 = vst.msk [vmem:[%s293] sm:$0xf] %vm305, 0.0
          %307 = vst.msk [vmem:[%s297] sm:$0xf] %vm305, 0.0
          %vm308 = vcmask 122880
          %309 = vst.msk [vmem:[%s300] sm:$0x1] %vm308, 0.0
        $region40: #{dice_ce_loss.1} parent=27 // pred_fallthru
          _
        %v310 = vld [vmem:[%s251] sm:$0xff]
        %v311 = vld [vmem:[%s251 + $0x8] sm:$0xff]
        %v312 = vld [vmem:[%s241] sm:$0xff]
        %v313 = vld [vmem:[%s241 + $0x8] sm:$0xff]
        %s314 = scalar_lea.vmem %s241, 16 [#allocation2]
        %v315 = vld [vmem:[%s314] sm:$0xff]
        %v316 = vld [vmem:[%s314 + $0x8] sm:$0xff]
        %s317 = scalar_lea.vmem %s241, 32 [#allocation2]
        %v318 = vld [vmem:[%s317] sm:$0xff]
        %v319 = vld [vmem:[%s317 + $0x8] sm:$0xff]
        %s320 = scalar_lea.vmem %s241, 48 [#allocation2]
        %v321 = vld [vmem:[%s320] sm:$0xff]
        %v322 = vld [vmem:[%s320 + $0x8] sm:$0xff]
        %v323 = vmax.f32 %v312, %v315
        %v324 = vmax.f32 %v313, %v316
        %v325 = vmax.f32 %v323, %v318
        %v326 = vmax.f32 %v324, %v319
        %v327 = vmax.f32 %v325, %v321
        %v328 = vmax.f32 %v326, %v322
        %v329 = vsub.f32 %v312, %v327
        %v330 = vsub.f32 %v313, %v328
        %v331 = vmul.f32 %v329, 1.442695
        %v332 = vpow.pop %v331
        %v333 = vmul.f32 %v330, 1.442695
        %v334 = vpow.pop %v333
        %v335 = vsub.f32 %v315, %v327
        %v336 = vsub.f32 %v316, %v328
        %v337 = vmul.f32 %v335, 1.442695
        %v338 = vpow.pop %v337
        %v339 = vmul.f32 %v336, 1.442695
        %v340 = vpow.pop %v339
        %v341 = vsub.f32 %v318, %v327
        %v342 = vsub.f32 %v319, %v328
        %v343 = vmul.f32 %v341, 1.442695
        %v344 = vpow.pop %v343
        %v345 = vmul.f32 %v342, 1.442695
        %v346 = vpow.pop %v345
        %v347 = vsub.f32 %v321, %v327
        %v348 = vsub.f32 %v322, %v328
        %v349 = vmul.f32 %v347, 1.442695
        %v350 = vpow.pop %v349
        %v351 = vmul.f32 %v348, 1.442695
        %v352 = vpow.pop %v351
        %v353 = vadd.f32 %v332, %v338
        %v354 = vadd.f32 %v334, %v340
        %v355 = vadd.f32 %v353, %v344
        %v356 = vadd.f32 %v354, %v346
        %v357 = vadd.f32 %v355, %v350
        %v358 = vadd.f32 %v356, %v352
        %v359 = vrcp.pop %v357
        %v360 = vrcp.pop %v358
        %vm361 = vcmp.eq.s32.totalorder %v310, 0
        %vm362 = vcmp.eq.s32.totalorder %v311, 0
        %v363 = vmul.f32 %v332, %v359
        %v364 = vmul.f32 %v334, %v360
        %v365 = vsel %vm361, %v363, 0.0
        %v366 = vsel %vm362, %v364, 0.0
        %vm367 = vcmask 130048
        %v368 = vsel %vm367, %v365, 0.0
        %v369 = vsel %vm367, %v366, 0.0
        %v370 = vadd.f32 %v368, %v369
        %v371 = vrot.slane %v370, 4
        %v372 = vadd.f32 %v370, %v371
        %v373 = vrot.slane %v372, 2
        %v374 = vadd.f32 %v372, %v373
        %v375 = vrot.slane %v374, 1
        %v376 = vadd.f32 %v374, %v375
        %v377 = vsel %vm367, %v363, 0.0
        %v378 = vsel %vm367, %v364, 0.0
        %v379 = vadd.f32 %v377, %v378
        %v380 = vrot.slane %v379, 4
        %v381 = vadd.f32 %v379, %v380
        %v382 = vrot.slane %v381, 2
        %v383 = vadd.f32 %v381, %v382
        %v384 = vrot.slane %v383, 1
        %v385 = vadd.f32 %v383, %v384
        %v386 = vsel %vm361, 1, 0
        %v387 = vsel %vm362, 1, 0
        %v388 = vcvt.s32.f32 %v386
        %v389 = vcvt.s32.f32 %v387
        %v390 = vsel %vm367, %v388, 0.0
        %v391 = vsel %vm367, %v389, 0.0
        %v392 = vadd.f32 %v390, %v391
        %v393 = vrot.slane %v392, 4
        %v394 = vadd.f32 %v392, %v393
        %v395 = vrot.slane %v394, 2
        %v396 = vadd.f32 %v394, %v395
        %v397 = vrot.slane %v396, 1
        %v398 = vadd.f32 %v396, %v397
        %v399 = vadd.f32 %v385, %v398
        %v400 = vld [vmem:[%s293] sm:$0x1]
        %v401 = vadd.f32 %v400, %v376
        %vm402 = vcmask 122880
        %403 = vst.msk [vmem:[%s293] sm:$0x1] %vm402, %v401
        %v404 = vld [vmem:[%s297] sm:$0x1]
        %v405 = vadd.f32 %v404, %v399
        %406 = vst.msk [vmem:[%s297] sm:$0x1] %vm402, %v405
        %v407 = vsel %vm361, %v312, 0.0
        %v408 = vsel %vm362, %v313, 0.0
        %v409 = vadd.f32 %v407, 0.0
        %v410 = vadd.f32 %v408, 0.0
        %vm411 = vcmp.eq.s32.totalorder %v310, 1
        %vm412 = vcmp.eq.s32.totalorder %v311, 1
        %v413 = vmul.f32 %v338, %v359
        %v414 = vmul.f32 %v340, %v360
        %v415 = vsel %vm411, %v413, 0.0
        %v416 = vsel %vm412, %v414, 0.0
        %v417 = vsel %vm367, %v415, 0.0
        %v418 = vsel %vm367, %v416, 0.0
        %v419 = vadd.f32 %v417, %v418
        %v420 = vrot.slane %v419, 4
        %v421 = vadd.f32 %v419, %v420
        %v422 = vrot.slane %v421, 2
        %v423 = vadd.f32 %v421, %v422
        %v424 = vrot.slane %v423, 1
        %v425 = vadd.f32 %v423, %v424
        %v426 = vsel %vm367, %v413, 0.0
        %v427 = vsel %vm367, %v414, 0.0
        %v428 = vadd.f32 %v426, %v427
        %v429 = vrot.slane %v428, 4
        %v430 = vadd.f32 %v428, %v429
        %v431 = vrot.slane %v430, 2
        %v432 = vadd.f32 %v430, %v431
        %v433 = vrot.slane %v432, 1
        %v434 = vadd.f32 %v432, %v433
        %v435 = vsel %vm411, 1, 0
        %v436 = vsel %vm412, 1, 0
        %v437 = vcvt.s32.f32 %v435
        %v438 = vcvt.s32.f32 %v436
        %v439 = vsel %vm367, %v437, 0.0
        %v440 = vsel %vm367, %v438, 0.0
        %v441 = vadd.f32 %v439, %v440
        %v442 = vrot.slane %v441, 4
        %v443 = vadd.f32 %v441, %v442
        %v444 = vrot.slane %v443, 2
        %v445 = vadd.f32 %v443, %v444
        %v446 = vrot.slane %v445, 1
        %v447 = vadd.f32 %v445, %v446
        %v448 = vadd.f32 %v434, %v447
        %v449 = vld [vmem:[%s293 + $0x1] sm:$0x1]
        %v450 = vadd.f32 %v449, %v425
        %451 = vst.msk [vmem:[%s293 + $0x1] sm:$0x1] %vm402, %v450
        %v452 = vld [vmem:[%s297 + $0x1] sm:$0x1]
        %v453 = vadd.f32 %v452, %v448
        %454 = vst.msk [vmem:[%s297 + $0x1] sm:$0x1] %vm402, %v453
        %v455 = vsel %vm411, %v315, 0.0
        %v456 = vsel %vm412, %v316, 0.0
        %v457 = vadd.f32 %v409, %v455
        %v458 = vadd.f32 %v410, %v456
        %vm459 = vcmp.eq.s32.totalorder %v310, 2
        %vm460 = vcmp.eq.s32.totalorder %v311, 2
        %v461 = vmul.f32 %v344, %v359
        %v462 = vmul.f32 %v346, %v360
        %v463 = vsel %vm459, %v461, 0.0
        %v464 = vsel %vm460, %v462, 0.0
        %v465 = vsel %vm367, %v463, 0.0
        %v466 = vsel %vm367, %v464, 0.0
        %v467 = vadd.f32 %v465, %v466
        %v468 = vrot.slane %v467, 4
        %v469 = vadd.f32 %v467, %v468
        %v470 = vrot.slane %v469, 2
        %v471 = vadd.f32 %v469, %v470
        %v472 = vrot.slane %v471, 1
        %v473 = vadd.f32 %v471, %v472
        %v474 = vsel %vm367, %v461, 0.0
        %v475 = vsel %vm367, %v462, 0.0
        %v476 = vadd.f32 %v474, %v475
        %v477 = vrot.slane %v476, 4
        %v478 = vadd.f32 %v476, %v477
        %v479 = vrot.slane %v478, 2
        %v480 = vadd.f32 %v478, %v479
        %v481 = vrot.slane %v480, 1
        %v482 = vadd.f32 %v480, %v481
        %v483 = vsel %vm459, 1, 0
        %v484 = vsel %vm460, 1, 0
        %v485 = vcvt.s32.f32 %v483
        %v486 = vcvt.s32.f32 %v484
        %v487 = vsel %vm367, %v485, 0.0
        %v488 = vsel %vm367, %v486, 0.0
        %v489 = vadd.f32 %v487, %v488
        %v490 = vrot.slane %v489, 4
        %v491 = vadd.f32 %v489, %v490
        %v492 = vrot.slane %v491, 2
        %v493 = vadd.f32 %v491, %v492
        %v494 = vrot.slane %v493, 1
        %v495 = vadd.f32 %v493, %v494
        %v496 = vadd.f32 %v482, %v495
        %v497 = vld [vmem:[%s293 + $0x2] sm:$0x1]
        %v498 = vadd.f32 %v497, %v473
        %499 = vst.msk [vmem:[%s293 + $0x2] sm:$0x1] %vm402, %v498
        %v500 = vld [vmem:[%s297 + $0x2] sm:$0x1]
        %v501 = vadd.f32 %v500, %v496
        %502 = vst.msk [vmem:[%s297 + $0x2] sm:$0x1] %vm402, %v501
        %v503 = vsel %vm459, %v318, 0.0
        %v504 = vsel %vm460, %v319, 0.0
        %v505 = vadd.f32 %v457, %v503
        %v506 = vadd.f32 %v458, %v504
        %vm507 = vcmp.eq.s32.totalorder %v310, 3
        %vm508 = vcmp.eq.s32.totalorder %v311, 3
        %v509 = vmul.f32 %v350, %v359
        %v510 = vmul.f32 %v352, %v360
        %v511 = vsel %vm507, %v509, 0.0
        %v512 = vsel %vm508, %v510, 0.0
        %v513 = vsel %vm367, %v511, 0.0
        %v514 = vsel %vm367, %v512, 0.0
        %v515 = vadd.f32 %v513, %v514
        %v516 = vrot.slane %v515, 4
        %v517 = vadd.f32 %v515, %v516
        %v518 = vrot.slane %v517, 2
        %v519 = vadd.f32 %v517, %v518
        %v520 = vrot.slane %v519, 1
        %v521 = vadd.f32 %v519, %v520
        %v522 = vsel %vm367, %v509, 0.0
        %v523 = vsel %vm367, %v510, 0.0
        %v524 = vadd.f32 %v522, %v523
        %v525 = vrot.slane %v524, 4
        %v526 = vadd.f32 %v524, %v525
        %v527 = vrot.slane %v526, 2
        %v528 = vadd.f32 %v526, %v527
        %v529 = vrot.slane %v528, 1
        %v530 = vadd.f32 %v528, %v529
        %v531 = vsel %vm507, 1, 0
        %v532 = vsel %vm508, 1, 0
        %v533 = vcvt.s32.f32 %v531
        %v534 = vcvt.s32.f32 %v532
        %v535 = vsel %vm367, %v533, 0.0
        %v536 = vsel %vm367, %v534, 0.0
        %v537 = vadd.f32 %v535, %v536
        %v538 = vrot.slane %v537, 4
        %v539 = vadd.f32 %v537, %v538
        %v540 = vrot.slane %v539, 2
        %v541 = vadd.f32 %v539, %v540
        %v542 = vrot.slane %v541, 1
        %v543 = vadd.f32 %v541, %v542
        %v544 = vadd.f32 %v530, %v543
        %v545 = vld [vmem:[%s293 + $0x3] sm:$0x1]
        %v546 = vadd.f32 %v545, %v521
        %547 = vst.msk [vmem:[%s293 + $0x3] sm:$0x1] %vm402, %v546
        %v548 = vld [vmem:[%s297 + $0x3] sm:$0x1]
        %v549 = vadd.f32 %v548, %v544
        %550 = vst.msk [vmem:[%s297 + $0x3] sm:$0x1] %vm402, %v549
        %v551 = vsel %vm507, %v321, 0.0
        %v552 = vsel %vm508, %v322, 0.0
        %v553 = vadd.f32 %v505, %v551
        %v554 = vadd.f32 %v506, %v552
        %v555 = vlog2.pop %v357
        %v556 = vmul.f32 %v555, 0.6931472
        %v557 = vlog2.pop %v358
        %v558 = vmul.f32 %v557, 0.6931472
        %v559 = vadd.f32 %v556, %v327
        %v560 = vadd.f32 %v558, %v328
        %v561 = vsub.f32 %v559, %v553
        %v562 = vsub.f32 %v560, %v554
        %v563 = vld [vmem:[%s300] sm:$0x1]
        %v564 = vsel %vm367, %v561, 0.0
        %v565 = vsel %vm367, %v562, 0.0
        %v566 = vadd.f32 %v564, %v565
        %v567 = vrot.slane %v566, 4
        %v568 = vadd.f32 %v566, %v567
        %v569 = vrot.slane %v568, 2
        %v570 = vadd.f32 %v568, %v569
        %v571 = vrot.slane %v570, 1
        %v572 = vadd.f32 %v570, %v571
        %v573 = vadd.f32 %v563, %v572
        %574 = vst.msk [vmem:[%s300] sm:$0x1] %vm402, %v573
        %p575 = scmp.lt.s32.totalorder %s26, 1
        %s576 = scalar_select %p575, %s26, 1
        %s577 = smul.addr %s576, 4
        %s578 = scalar_lea.vmem %s2, %s577
        %p579 = scmp.lt.s32.totalorder %s26, 1
        %s580 = scalar_select %p579, %s26, 1
        %s581 = smul.addr %s580, 4
        %s582 = scalar_lea.vmem %s3, %s581
        %p583 = scmp.lt.s32.totalorder %s26, 1
        %s584 = scalar_select %p583, %s26, 1
        %s585 = scalar_lea.vmem %s4, %s584
        // Predicated region
        $region41: #{dice_ce_loss.1} parent=27 // pred_check
          %p586 = pneg %p108
        $region42: #{dice_ce_loss.1} parent=27 // pred_check_branch
          %588 = sbr.rel (%p586) target = $region44
        $region43: #{dice_ce_loss.1} parent=27 // pred_region
          _
        $region44: #{dice_ce_loss.1} parent=27 // pred_fallthru
          _
        // Predicated region
        $region45: #{dice_ce_loss.1} parent=27 // pred_check
          %p589 = pneg %p134
        $region46: #{dice_ce_loss.1} parent=27 // pred_check_branch
          %591 = sbr.rel (%p589) target = $region48
        $region47: #{dice_ce_loss.1} parent=27 // pred_region
          _
        $region48: #{dice_ce_loss.1} parent=27 // pred_fallthru
          _
        // Predicated region
        $region49: #{dice_ce_loss.1} parent=27 // pred_check
          %p592 = pneg %p160
        $region50: #{dice_ce_loss.1} parent=27 // pred_check_branch
          %594 = sbr.rel (%p592) target = $region52
        $region51: #{dice_ce_loss.1} parent=27 // pred_region
          _
        $region52: #{dice_ce_loss.1} parent=27 // pred_fallthru
          _
      $region28: #{dice_ce_loss.1} parent=5 // pred_fallthru
        _
      %p595 = scmp.le.s32.totalorder 2, %s17
      // Predicated region
      $region53: #{dice_ce_loss.1} parent=5 // pred_check
        %p596 = pneg %p595
      $region54: #{dice_ce_loss.1} parent=5 // pred_check_branch
        %598 = sbr.rel (%p596) target = $region56
      $region55: #{dice_ce_loss.1} parent=5 // pred_region
        %s599 = ssub.s32 %s17, 2
        // Predicated region
        $region57: #{dice_ce_loss.1} parent=55 // pred_check
          %p600 = pneg %p114
        $region58: #{dice_ce_loss.1} parent=55 // pred_check_branch
          %602 = sbr.rel (%p600) target = $region60
        $region59: #{dice_ce_loss.1} parent=55 // pred_region
          %p603 = scmp.lt.s32.totalorder %s28, 1
          %s604 = scalar_select %p603, %s28, 1
          %s605 = smul.addr %s604, 4
          %s606 = scalar_lea.vmem %s2, %s605
        $region60: #{dice_ce_loss.1} parent=55 // pred_fallthru
          _
        // Predicated region
        $region61: #{dice_ce_loss.1} parent=55 // pred_check
          %p607 = pneg %p140
        $region62: #{dice_ce_loss.1} parent=55 // pred_check_branch
          %609 = sbr.rel (%p607) target = $region64
        $region63: #{dice_ce_loss.1} parent=55 // pred_region
          %p610 = scmp.lt.s32.totalorder %s28, 1
          %s611 = scalar_select %p610, %s28, 1
          %s612 = smul.addr %s611, 4
          %s613 = scalar_lea.vmem %s3, %s612
        $region64: #{dice_ce_loss.1} parent=55 // pred_fallthru
          _
        // Predicated region
        $region65: #{dice_ce_loss.1} parent=55 // pred_check
          %p614 = pneg %p166
        $region66: #{dice_ce_loss.1} parent=55 // pred_check_branch
          %616 = sbr.rel (%p614) target = $region68
        $region67: #{dice_ce_loss.1} parent=55 // pred_region
          %p617 = scmp.lt.s32.totalorder %s28, 1
          %s618 = scalar_select %p617, %s28, 1
          %s619 = scalar_lea.vmem %s4, %s618
        $region68: #{dice_ce_loss.1} parent=55 // pred_fallthru
          _
      $region56: #{dice_ce_loss.1} parent=5 // pred_fallthru
        _
    $region6: #{dice_ce_loss.1} parent=1 // loop_footer
      %s21 = sadd.s32 1, %s17
    $region7: #{dice_ce_loss.1} parent=1 // loop_footer_branch
      %16 = sbr.rel target = $region3
    $region8: #{dice_ce_loss.1} parent=1 // loop_exit
      _
    %620 = vsyncpa [#allocation3], 1
    %s621 = scalar_lea.sflag [#allocation3], 1
    %622 = vsyncpa %s621, 1
    %623 = vsyncpa [#allocation5], 1
    %s624 = scalar_lea.sflag [#allocation5], 1
    %625 = vsyncpa %s624, 1

</llo_original>
